<compile_context>
chip_gen: v6e
topology: v6e:2x2x1
jax: 0.10.0
libtpu: 0.0.40
codegen_flags: <defaults>
</compile_context>

<pallas_src>
import functools

import jax
import jax.numpy as jnp
from jax.experimental import pallas as pl
from jax.experimental.pallas import tpu as pltpu

_LANE = 128


def rmsnorm_kernel(x_ref, scale_ref, o_ref, *, eps, inv_d):
    # Pass 1: reduction.  The f32 upcast used for the sum of squares is dead
    # after this statement; nothing full-block f32 survives to the store.
    xsq = x_ref[...].astype(jnp.float32)                       # (row_tile, d_pad)
    ms = jnp.sum(xsq * xsq, axis=-1, keepdims=True) * inv_d    # true-d_model divisor
    inv_rms = jax.lax.rsqrt(ms + eps)                          # EUP rsqrt (free slot)
    # Pass 2: re-read x (ref reads are not CSE'd), normalize, scale, store.
    # scale_ref is already f32 (pre-cast in the wrapper), shape (1, d_pad).
    o_ref[...] = (x_ref[...].astype(jnp.float32) * inv_rms * scale_ref[...]).astype(
        o_ref.dtype
    )


def _sublane(dtype):
    # Sub-32-bit dtypes pack along sublanes: 8 rows f32, 16 bf16/f16, 32 int8.
    return max(8, 32 // jnp.dtype(dtype).itemsize)


def _vmem_capacity_bytes():
    try:
        return int(pltpu.get_tpu_info().vmem_capacity_bytes)
    except Exception:
        return 64 * 1024 * 1024  # conservative: v7x per-TensorCore VMEM


def _snap_to_divisor(rows, tile, sub):
    """Prefer a tile (multiple of `sub`) that divides rows, if one exists
    within 2x of the byte-derived target; otherwise keep the byte target."""
    if rows % tile == 0:
        return tile
    t = (tile // sub) * sub
    floor = max(sub, tile // 2)
    while t >= floor:
        if rows % t == 0:
            return t
        t -= sub
    return tile  # accept a masked tail block rather than a tiny tile


def _pick_row_tile(rows, d_pad, dtype, vmem_capacity):
    """Largest row tile whose pipelined footprint fits the VMEM budget.
    Clamped by bytes only (no hard row cap)."""
    sub = _sublane(dtype)
    itemsize = jnp.dtype(dtype).itemsize
    if vmem_capacity >= 128 * 1024 * 1024:
        target_in_block = 8 * 1024 * 1024   # v5e / v6e: 128 MiB VMEM
    else:
        target_in_block = 6 * 1024 * 1024   # v7x: 64 MiB VMEM, no f32 scratch
    tile = target_in_block // max(1, d_pad * itemsize)
    tile = max(sub, (tile // sub) * sub)
    if tile >= rows:
        return rows  # full-extent block along rows is always layout-legal
    return _snap_to_divisor(rows, tile, sub)


def _vmem_limit_bytes(row_tile, d_pad, dtype, vmem_capacity):
    itemsize = jnp.dtype(dtype).itemsize
    block_elems = row_tile * d_pad
    need = (
        2 * 2 * block_elems * itemsize  # double-buffered in + out blocks
        + block_elems * 4               # slack for transient f32 vregs in pass 2
        + 2 * d_pad * 4                 # scale block (tiny)
        + (2 << 20)                     # compiler-internal scratch slack
    )
    lo = 32 * 1024 * 1024
    hi = max(lo, int(0.75 * vmem_capacity))
    return int(min(max(need, lo), hi))


def _dimension_semantics():
    # Only v7x has 2 TensorCores per chip; plain "parallel" barely changes
    # codegen there, CORE_PARALLEL actually splits the grid across TCs.
    try:
        kind = jax.devices()[0].device_kind.lower()
    except Exception:
        kind = ""
    if "v7" in kind:
        return (pltpu.CORE_PARALLEL,)
    return ("parallel",)


def rmsnorm(x, scale, eps=1e-8, row_tile=None):
    """x: (..., d_model), scale: (d_model,). Returns same shape/dtype as x."""
    orig_shape = x.shape
    d_model = int(orig_shape[-1])
    rows = 1
    for s in orig_shape[:-1]:
        rows *= int(s)

    # Lane-dense layout: pad the feature axis to a multiple of 128 so the
    # output store is unmasked.  Padded lanes are zero (contribute 0 to the
    # sum of squares) and padded scale is zero; the divisor uses true d_model.
    d_pad = ((d_model + _LANE - 1) // _LANE) * _LANE
    pad = d_pad - d_model

    x2d = x.reshape(rows, d_model)
    scale2d = scale.astype(jnp.float32).reshape(1, d_model)
    if pad:
        x2d = jnp.pad(x2d, ((0, 0), (0, pad)))
        scale2d = jnp.pad(scale2d, ((0, 0), (0, pad)))

    vmem_capacity = _vmem_capacity_bytes()
    sub = _sublane(x.dtype)
    if row_tile is None:
        row_tile = _pick_row_tile(rows, d_pad, x.dtype, vmem_capacity)
    else:
        row_tile = min(int(row_tile), rows)
        if row_tile < rows:
            # Enforce the (sublane, 128) layout rule on the row axis.
            row_tile = max(sub, (row_tile // sub) * sub)

    grid = (pl.cdiv(rows, row_tile),)
    kernel = functools.partial(
        rmsnorm_kernel, eps=float(eps), inv_d=1.0 / float(d_model)
    )
    compiler_params = pltpu.CompilerParams(
        dimension_semantics=_dimension_semantics(),
        vmem_limit_bytes=_vmem_limit_bytes(row_tile, d_pad, x.dtype, vmem_capacity),
    )

    out = pl.pallas_call(
        kernel,
        out_shape=jax.ShapeDtypeStruct((rows, d_pad), x.dtype),
        grid_spec=pltpu.PrefetchScalarGridSpec(
            num_scalar_prefetch=0,
            grid=grid,
            in_specs=[
                pl.BlockSpec((row_tile, d_pad), lambda i: (i, 0)),
                # Constant index_map: (1, d_pad) f32 scale block is fetched
                # once and stays VMEM-resident; no re-DMA across grid steps.
                pl.BlockSpec((1, d_pad), lambda i: (0, 0)),
            ],
            out_specs=pl.BlockSpec((row_tile, d_pad), lambda i: (i, 0)),
        ),
        compiler_params=compiler_params,
    )(x2d, scale2d)

    if pad:
        out = out[:, :d_model]
    return out.reshape(orig_shape)


def _rmsnorm_ref(x, scale, eps):
    rms = jnp.sqrt(jnp.mean(x.astype(jnp.float32) ** 2, axis=-1, keepdims=True) + eps)
    return (scale * (x / rms)).astype(x.dtype)


if __name__ == "__main__":
    eps = 1e-8  # matches the module's default (PyTorch parity)
    key = jax.random.PRNGKey(0)

    # 1) Small shape implied by the module: (batch=2, seq=8, d_model=32).
    #    d_model=32 exercises the lane-padding (32 -> 128) path.
    batch, seq, d_model = 2, 8, 32
    x = jax.random.normal(key, (batch, seq, d_model), dtype=jnp.float32)
    scale = jnp.ones((d_model,), dtype=jnp.float32)  # nn.Parameter(torch.ones(d_model))
    y = rmsnorm(x, scale, eps=eps)
    jax.block_until_ready(y)
    assert y.shape == x.shape and y.dtype == x.dtype
    assert jnp.allclose(y, _rmsnorm_ref(x, scale, eps), atol=1e-5, rtol=1e-5), \
        "mismatch vs reference (small / padded-lane shape)"

    # 2) Exercise the tiled multi-step grid path (lane-dense d_model=128,
    #    row_tile < rows so the row axis is actually pipelined / core-sharded).
    x2 = jax.random.normal(jax.random.PRNGKey(0), (4, 32, 128), dtype=jnp.float32)
    scale2 = jax.random.normal(jax.random.PRNGKey(1), (128,), dtype=jnp.float32)
    y2 = rmsnorm(x2, scale2, eps=eps, row_tile=32)
    jax.block_until_ready(y2)
    assert jnp.allclose(y2, _rmsnorm_ref(x2, scale2, eps), atol=1e-5, rtol=1e-5), \
        "mismatch vs reference (tiled path)"

    # 3) Non-128-multiple d_model > 128 and non-divisible rows (tail block +
    #    lane padding 160 -> 256), bf16 input with f32 accumulation.
    x3 = jax.random.normal(jax.random.PRNGKey(2), (3, 7, 160), dtype=jnp.bfloat16)
    scale3 = jax.random.normal(jax.random.PRNGKey(3), (160,), dtype=jnp.float32)
    y3 = rmsnorm(x3, scale3, eps=eps)
    jax.block_until_ready(y3)
    assert jnp.allclose(
        y3.astype(jnp.float32),
        _rmsnorm_ref(x3, scale3, eps).astype(jnp.float32),
        atol=2e-2, rtol=2e-2,
    ), "mismatch vs reference (bf16 / padded / tail-block path)"

    print("KERNEL_OK")
</pallas_src>

<mosaic_0001>
module attributes {stable_mosaic.version = 11 : i64} {
  func.func @rmsnorm_kernel(%arg0: i32, %arg1: memref<16x128xf32, #tpu.memory_space<vmem>>, %arg2: memref<1x128xf32, #tpu.memory_space<vmem>>, %arg3: memref<16x128xf32, #tpu.memory_space<vmem>>) attributes {dimension_semantics = [#tpu.dimension_semantics<parallel>], iteration_bounds = array<i64: 1>, scalar_prefetch = 0 : i64, scratch_operands = 0 : i64, tpu.core_type = #tpu.core_type<tc>, window_params = [{transform_indices = @transform_0, window_bounds = array<i64: 16, 128>}, {pipeline_mode = #tpu.pipeline_mode<synchronous>, transform_indices = @transform_1, window_bounds = array<i64: 1, 128>}, {transform_indices = @transform_2, window_bounds = array<i64: 16, 128>}]} {
    %c0 = arith.constant 0 : index
    %c0_0 = arith.constant 0 : index
    %0 = vector.load %arg1[%c0, %c0_0] : memref<16x128xf32, #tpu.memory_space<vmem>>, vector<16x128xf32>
    %1 = arith.mulf %0, %0 : vector<16x128xf32>
    %cst = arith.constant dense<0.000000e+00> : vector<16xf32>
    %2 = vector.multi_reduction <add>, %1, %cst [1] : vector<16x128xf32> to vector<16xf32>
    %3 = vector.shape_cast %2 : vector<16xf32> to vector<16x1xf32>
    %cst_1 = arith.constant 3.125000e-02 : f32
    %4 = vector.broadcast %cst_1 : f32 to vector<16x1xf32>
    %5 = arith.mulf %3, %4 : vector<16x1xf32>
    %cst_2 = arith.constant 9.99999993E-9 : f32
    %6 = vector.broadcast %cst_2 : f32 to vector<16x1xf32>
    %7 = arith.addf %5, %6 : vector<16x1xf32>
    %8 = math.rsqrt %7 : vector<16x1xf32>
    %c0_3 = arith.constant 0 : index
    %c0_4 = arith.constant 0 : index
    %9 = vector.load %arg1[%c0_3, %c0_4] : memref<16x128xf32, #tpu.memory_space<vmem>>, vector<16x128xf32>
    %10 = vector.broadcast %8 : vector<16x1xf32> to vector<16x128xf32>
    %11 = arith.mulf %9, %10 : vector<16x128xf32>
    %c0_5 = arith.constant 0 : index
    %c0_6 = arith.constant 0 : index
    %12 = vector.load %arg2[%c0_5, %c0_6] : memref<1x128xf32, #tpu.memory_space<vmem>>, vector<1x128xf32>
    %13 = vector.broadcast %12 : vector<1x128xf32> to vector<16x128xf32>
    %14 = arith.mulf %11, %13 : vector<16x128xf32>
    %c0_7 = arith.constant 0 : index
    %c0_8 = arith.constant 0 : index
    %15 = vector.load %arg3[%c0_7, %c0_8] : memref<16x128xf32, #tpu.memory_space<vmem>>, vector<16x128xf32>
    tpu.vector_store %arg3[%c0_7, %c0_8], %14 {strides = array<i32>} : memref<16x128xf32, #tpu.memory_space<vmem>>, vector<16x128xf32>,
    return
  }
  func.func @transform_0(%arg0: i32) -> (i32, i32) {
    %c0_i32 = arith.constant 0 : i32
    %c0_i32_0 = arith.constant 0 : i32
    return %arg0, %c0_i32 : i32, i32
  }
  func.func @transform_1(%arg0: i32) -> (i32, i32) {
    %c0_i32 = arith.constant 0 : i32
    %c0_i32_0 = arith.constant 0 : i32
    %c0_i32_1 = arith.constant 0 : i32
    return %c0_i32, %c0_i32_0 : i32, i32
  }
  func.func @transform_2(%arg0: i32) -> (i32, i32) {
    %c0_i32 = arith.constant 0 : i32
    %c0_i32_0 = arith.constant 0 : i32
    return %arg0, %c0_i32 : i32, i32
  }
}

</mosaic_0001>

<llo_original>
// kernel: tpu_custom_call.1
$region0: #{tpu_custom_call.1}
  #allocation0 [shape = 'u32[]', space=smem, size = 0x4, offset = 0x4, fixed_abs, tag = 'smem constant byte address 0x4 - core index']
  #allocation1 [shape = 'u32[144,128]{1,0:T(1,128)}', space=vmem, size = 0x12000, scoped, tag = 'internal scratch']
  %s0 = inlined_call_operand.hbm [shape: f32[16,128], index: 0, kind: input, shape index: {}]
  %s1 = inlined_call_operand.vmem [shape: f32[1,128], index: 1, kind: input, shape index: {}]
  %s2 = inlined_call_operand.hbm [shape: f32[16,128], index: 2, kind: output, shape index: {}]
  %s3 = sld [smem:[#allocation0]]
  $region22: #{tpu_custom_call.1} parent=0
    _
  %s5 = ssub.s32 1, %s3
  %s6 = scalar_select 0, %s5, %s3
  $region1: #{tpu_custom_call.1} parent=0
    #allocation2 [shape = 'u8[8192]{0}', space=vmem, size = 0x2000, scoped, tag = 'input window, operand 0, single buffered']
    #allocation3 [shape = 's32[1]{0}', space=sflag, size = 0x4, scoped, tag = 'scoped memory for tpu_custom_call.1']
    #allocation4 [shape = 's32[1]{0}', space=sflag, size = 0x4, scoped, tag = 'scoped memory for tpu_custom_call.1']
    #allocation5 [shape = 'u8[8192]{0}', space=vmem, size = 0x2000, scoped, tag = 'output window, operand 0, single buffered']
    %7 = vsyncpa [#allocation3], 0
    %8 = vsyncpa [#allocation4], 0
    // Predicated region
    $region2: #{tpu_custom_call.1} parent=1 // pred_check
      _
    $region3: #{tpu_custom_call.1} parent=1 // pred_check_branch
      %10 = sbr.rel (0) target = $region5
    $region4: #{tpu_custom_call.1} parent=1 // pred_region
      %s12 = ssub.s32 256, 256
      %13 = vsyncadd [#allocation3], %s12
      %s14 = sshll.u32 [#allocation2], 4
      %s15 = int_to_ptr.vmem [resolvable:$true] %s14
      %20 = dma.hbm_to_vmem [thread:$0]  %s0, 256, %s15, [#allocation3], 128, 128, 8
    $region5: #{tpu_custom_call.1} parent=1 // pred_fallthru
      _
    // Predicated region
    $region6: #{tpu_custom_call.1} parent=1 // pred_check
      _
    $region7: #{tpu_custom_call.1} parent=1 // pred_check_branch
      %22 = sbr.rel (0) target = $region9
    $region8: #{tpu_custom_call.1} parent=1 // pred_region
      _
    $region9: #{tpu_custom_call.1} parent=1 // pred_fallthru
      _
    // Predicated region
    $region10: #{tpu_custom_call.1} parent=1 // pred_check
      _
    $region11: #{tpu_custom_call.1} parent=1 // pred_check_branch
      %24 = sbr.rel (0) target = $region13
    $region12: #{tpu_custom_call.1} parent=1 // pred_region
      %25 = dma.done [#allocation3], 256
    $region13: #{tpu_custom_call.1} parent=1 // pred_fallthru
      _
    %v26 = vld [vmem:[#allocation2] sm:$0xff]
    %v27 = vld [vmem:[#allocation2 + $0x8] sm:$0xff]
    %v28 = vmul.f32 %v26, %v26
    %v29 = vmul.f32 %v27, %v27
    %30 = vadd.xlane.f32.xlu0 %v28
    %v31 = vpop.xlane.xlu0 %30
    %32 = vadd.xlane.f32.xlu0 %v29
    %v33 = vpop.xlane.xlu0 %32
    %v34 = vmul.f32 %v31, 0.03125
    %v35 = vmul.f32 %v33, 0.03125
    %v36 = vadd.f32 %v34, 1e-08
    %v37 = vadd.f32 %v35, 1e-08
    %v38 = vrsqrt.pop %v36
    %v39 = vrsqrt.pop %v37
    %v40 = vmul.f32 %v26, %v38
    %v41 = vmul.f32 %v27, %v39
    %v42 = vld [vmem:[%s1] sm:$0x1]
    %v44 = vlaneseq
    %v45 = vshrl.u32 %v44, 7
    %v46 = vsub.s32 0, %v45
    %v47 = vrot.slane %v42, %v46
    %v49 = vmul.f32 %v40, %v47
    %v50 = vmul.f32 %v41, %v47
    %51 = vst [vmem:[#allocation5] sm:$0xff] %v49
    %52 = vst [vmem:[#allocation5 + $0x8] sm:$0xff] %v50
    // Predicated region
    $region14: #{tpu_custom_call.1} parent=1 // pred_check
      _
    $region15: #{tpu_custom_call.1} parent=1 // pred_check_branch
      %54 = sbr.rel (0) target = $region17
    $region16: #{tpu_custom_call.1} parent=1 // pred_region
      %s56 = ssub.s32 256, 256
      %57 = vsyncadd [#allocation4], %s56
      %s58 = sshll.u32 [#allocation5], 4
      %s59 = int_to_ptr.vmem [resolvable:$true] %s58
      %64 = dma.vmem_to_hbm [thread:$0]  %s59, 256, %s2, [#allocation4], 128, 128, 8
    $region17: #{tpu_custom_call.1} parent=1 // pred_fallthru
      _
    // Predicated region
    $region18: #{tpu_custom_call.1} parent=1 // pred_check
      _
    $region19: #{tpu_custom_call.1} parent=1 // pred_check_branch
      %66 = sbr.rel (0) target = $region21
    $region20: #{tpu_custom_call.1} parent=1 // pred_region
      %67 = dma.done [#allocation4], 256
    $region21: #{tpu_custom_call.1} parent=1 // pred_fallthru
      _
    %68 = vsyncpa [#allocation3], 1
    %69 = vsyncpa [#allocation4], 1

</llo_original>
